<compile_context>
chip_gen: v6e
topology: v6e:2x2x1
jax: 0.10.0
libtpu: 0.0.40
codegen_flags: <defaults>
</compile_context>

<pallas_src>
import jax
import jax.numpy as jnp
from jax.experimental import pallas as pl
from jax.experimental.pallas import tpu as pltpu

DIM = 32          # feature dimension of the flow
FLOW_LENGTH = 4   # number of stacked Planar transforms
BATCH = 260       # example batch (deliberately NOT a multiple of the tile / packing)


def _round_up(x, m):
    return (x + m - 1) // m * m


def _cdiv(a, b):
    return (a + b - 1) // b


def planar_flow_kernel(z_ref, wtb_ref, uhb_ref, p_ref, ssum_ref, z_out_ref, ld_ref):
    """One batch-tile of the full planar-flow stack, P samples packed per row.

    z_ref    : (TR, P*D)    packed input samples (P samples per 128-lane row)
    wtb_ref  : (P*D, P*L)   blockdiag_P(W^T)
    uhb_ref  : (P*L, P*D)   blockdiag_P(u_hat)
    p_ref    : (P*L+3, P*L) rows [0,P*L) = blockdiag_P(C), C[k,l] = u_hat_k . w_l
                            row P*L   = tile_P(b)
                            row P*L+1 = tile_P(diag C) = w_l . u_hat_l
                            row P*L+2 = layer index of each lane (as f32)
    ssum_ref : (P*L, P)     group-sum matrix (layer lanes -> per-sample column)
    z_out_ref: (TR, P*D)    transformed samples (packed, dtype of z)
    ld_ref   : (TR, P)      per-sample summed log|det J| (f32)
    """
    f32 = jnp.float32
    PL = uhb_ref.shape[0]          # P * L
    P = ld_ref.shape[-1]
    L = PL // P

    z0 = z_ref[...].astype(f32)                                   # (TR, P*D)
    c_block = p_ref[0:PL, :].astype(f32)                          # (PL, PL)
    b_row = p_ref[PL:PL + 1, :].astype(f32)                       # (1, PL)
    wu_row = p_ref[PL + 1:PL + 2, :].astype(f32)                  # (1, PL)
    layer_row = p_ref[PL + 2:PL + 3, :].astype(f32)               # (1, PL)

    # One MXU matmul computes z0 . w_l for every packed sample and layer at once.
    base = jnp.dot(z0, wtb_ref[...].astype(f32),
                   preferred_element_type=f32)                    # (TR, PL)

    # Length-L recurrence on a (TR, PL) tile.  At step l, the lanes with
    # layer-index l hold exactly  z0.w_l + b_l + sum_{k<l} a_k * C[k,l].
    pre = base + b_row
    acts = jnp.zeros_like(pre)

    for l in range(L):                      # static unroll; the only serial chain
        a_full = jnp.tanh(pre)              # only layer-l lanes are consumed
        a_l = jnp.where(layer_row == float(l), a_full, 0.0)
        acts = acts + a_l
        if l + 1 < L:
            # adds a_l * C[l, :] within each sample's lane group; only
            # not-yet-consumed lanes (layer > l) are read afterwards.
            pre = pre + jnp.dot(a_l, c_block, preferred_element_type=f32)

    # z_out = z0 + sum_l a_l * u_hat_l   (second big MXU matmul)
    z_new = z0 + jnp.dot(acts, uhb_ref[...].astype(f32),
                         preferred_element_type=f32)              # (TR, P*D)
    z_out_ref[...] = z_new.astype(z_out_ref.dtype)

    # sum_l log(|1 + (1 - a_l^2) * (w_l . u_hat_l)| + 1e-8), per-layer epsilon kept.
    dets = 1.0 + (1.0 - acts * acts) * wu_row                     # (TR, PL)
    log_terms = jnp.log(jnp.abs(dets) + 1e-8)
    # Per-sample sum over its L layer lanes: tiny epilogue matmul, off the serial path.
    ld_ref[...] = jnp.dot(log_terms, ssum_ref[...].astype(f32),
                          preferred_element_type=f32)             # (TR, P)


def normalizing_flow_forward(z, w, u, b, *, block_b=4096):
    """Pallas-backed forward of NormalizingFlow(flow_type='planar_flow').

    z : (B, D) float32 or bfloat16.  Math runs in f32; z_out keeps z's dtype.
        bf16 I/O is recommended for throughput-sensitive callers (kernel is
        HBM-bound; bf16 halves the streamed bytes).
    w : (L, D) float32, u : (L, D) float32, b : (L,) float32
    block_b : target samples per grid step (auto-doubled for 16-bit z).
    returns (z_out (B, D), sum_log_jacobians (B,) f32)
    """
    B, D = z.shape
    L = w.shape[0]
    w = w.astype(jnp.float32)
    u = u.astype(jnp.float32)
    b = b.astype(jnp.float32)

    # --- parameter glue (depends only on params, not on z) -----------------
    alpha = jnp.sum(w * u, axis=-1, keepdims=True)                # (L, 1)
    a_prime = -1.0 + jax.nn.softplus(alpha)
    u_hat = u + (a_prime - alpha) * w / jnp.sum(w * w, axis=-1, keepdims=True)
    c_mat = u_hat @ w.T                                           # (L, L)
    wu = jnp.diagonal(c_mat)                                      # (L,)

    # --- lane packing: P samples per 128-lane vreg row ----------------------
    P = (128 // D) if (D <= 128 and 128 % D == 0) else 1          # P=1 falls back cleanly
    PL = P * L
    eye_p = jnp.eye(P, dtype=jnp.float32)
    wt_block = jnp.kron(eye_p, w.T)                               # (P*D, PL)
    uh_block = jnp.kron(eye_p, u_hat)                             # (PL, P*D)
    c_block = jnp.kron(eye_p, c_mat)                              # (PL, PL)
    layer_idx = jnp.tile(jnp.arange(L, dtype=jnp.float32), P)     # (PL,)
    pslab = jnp.concatenate(
        [c_block,
         jnp.tile(b, P).reshape(1, PL),
         jnp.tile(wu, P).reshape(1, PL),
         layer_idx.reshape(1, PL)], axis=0)                       # (PL+3, PL)
    ssum = jnp.kron(eye_p, jnp.ones((L, 1), jnp.float32))         # (PL, P)

    # --- batch tiling: big, balanced tiles; >=2 (even) grid steps for v7x ---
    eff_block = block_b * (2 if jnp.dtype(z.dtype).itemsize == 2 else 1)
    n_tiles = max(2, _cdiv(B, max(eff_block, 1)))
    if n_tiles % 2:
        n_tiles += 1                                              # balance across 2 TCs
    total_rows = _cdiv(B, P)                                      # packed rows needed
    rows_per_tile = _round_up(max(_cdiv(total_rows, n_tiles), 1), 16)
    rows_pad = rows_per_tile * n_tiles
    Bp = rows_pad * P

    zp = jnp.pad(z, ((0, Bp - B), (0, 0))) if Bp != B else z      # zero-padded rows
    z_packed = zp.reshape(rows_pad, P * D)                        # free, contiguous

    z_out_p, ld_p = pl.pallas_call(
        planar_flow_kernel,
        out_shape=(
            jax.ShapeDtypeStruct((rows_pad, P * D), z.dtype),
            jax.ShapeDtypeStruct((rows_pad, P), jnp.float32),
        ),
        grid=(n_tiles,),
        in_specs=[
            pl.BlockSpec((rows_per_tile, P * D), lambda i: (i, 0)),   # z tile
            pl.BlockSpec((P * D, PL), lambda i: (0, 0)),              # blockdiag(W^T)
            pl.BlockSpec((PL, P * D), lambda i: (0, 0)),              # blockdiag(u_hat)
            pl.BlockSpec((PL + 3, PL), lambda i: (0, 0)),             # C / b / wu / layer slab
            pl.BlockSpec((PL, P), lambda i: (0, 0)),                  # group-sum matrix
        ],
        out_specs=(
            pl.BlockSpec((rows_per_tile, P * D), lambda i: (i, 0)),
            pl.BlockSpec((rows_per_tile, P), lambda i: (i, 0)),
        ),
        compiler_params=pltpu.CompilerParams(
            dimension_semantics=("parallel",),        # batch tiles shard across TCs
            vmem_limit_bytes=32 * 1024 * 1024,
        ),
    )(z_packed, wt_block, uh_block, pslab, ssum)

    z_out = z_out_p.reshape(Bp, D)[:B]
    logdet = ld_p.reshape(Bp)[:B]
    return z_out, logdet


def normalizing_flow_forward_ref(z, w, u, b):
    """Pure-JAX reference (mirrors the PyTorch loop over transforms)."""
    alpha = jnp.sum(w * u, axis=-1, keepdims=True)
    a_prime = -1.0 + jax.nn.softplus(alpha)
    u_hat = u + (a_prime - alpha) * w / jnp.sum(w * w, axis=-1, keepdims=True)

    sum_ldj = jnp.zeros((z.shape[0],), jnp.float32)
    z = z.astype(jnp.float32)
    for l in range(w.shape[0]):
        pre = z @ w[l] + b[l]
        act = jnp.tanh(pre)
        z = z + act[:, None] * u_hat[l][None, :]
        det = 1.0 + (1.0 - act * act) * jnp.dot(w[l], u_hat[l])
        sum_ldj = sum_ldj + jnp.log(jnp.abs(det) + 1e-8)
    return z, sum_ldj


if __name__ == "__main__":
    key = jax.random.PRNGKey(0)
    k_z, k_w, k_u, k_z2 = jax.random.split(key, 4)

    # Deterministic parameter init (pyro Planar.reset_parameters style):
    #   w, u ~ U(-1/sqrt(dim), 1/sqrt(dim)),  bias = 0
    stdv = 1.0 / (DIM ** 0.5)
    w = jax.random.uniform(k_w, (FLOW_LENGTH, DIM), jnp.float32, -stdv, stdv)
    u = jax.random.uniform(k_u, (FLOW_LENGTH, DIM), jnp.float32, -stdv, stdv)
    b = jnp.zeros((FLOW_LENGTH,), jnp.float32)

    fwd = jax.jit(normalizing_flow_forward)

    # --- f32 path, small awkward batch (exercises packing, padding, 2 tiles) ---
    z = jax.random.normal(k_z, (BATCH, DIM), jnp.float32)
    z_out, sum_ldj = fwd(z, w, u, b)
    jax.block_until_ready((z_out, sum_ldj))
    z_ref, ldj_ref = normalizing_flow_forward_ref(z, w, u, b)
    assert z_out.shape == (BATCH, DIM) and sum_ldj.shape == (BATCH,)
    assert jnp.allclose(z_out, z_ref, atol=1e-4, rtol=1e-4)
    assert jnp.allclose(sum_ldj, ldj_ref, atol=1e-4, rtol=1e-4)

    # --- bf16 I/O path at a throughput-shaped batch (big balanced tiles) ---
    B_LARGE = 6144
    z_big = jax.random.normal(k_z2, (B_LARGE, DIM), jnp.float32)
    z_big16 = z_big.astype(jnp.bfloat16)
    z_out16, ldj16 = fwd(z_big16, w, u, b)
    jax.block_until_ready((z_out16, ldj16))
    z_ref16, ldj_ref16 = normalizing_flow_forward_ref(
        z_big16.astype(jnp.float32), w, u, b)
    assert z_out16.dtype == jnp.bfloat16 and ldj16.dtype == jnp.float32
    assert jnp.allclose(z_out16.astype(jnp.float32), z_ref16, atol=5e-2, rtol=5e-2)
    assert jnp.allclose(ldj16, ldj_ref16, atol=1e-3, rtol=1e-3)

    # TODO(synk): radial_flow / iaf_flow branches and log_prob's MultivariateNormal
    # base density are not exercised by forward(); only the default planar_flow
    # forward pass is implemented here.

    print("KERNEL_OK")
</pallas_src>

<mosaic_0001>
module attributes {stable_mosaic.version = 11 : i64} {
  func.func @planar_flow_kernel(%arg0: i32, %arg1: memref<48x128xf32, #tpu.memory_space<vmem>>, %arg2: memref<128x16xf32, #tpu.memory_space<vmem>>, %arg3: memref<16x128xf32, #tpu.memory_space<vmem>>, %arg4: memref<19x16xf32, #tpu.memory_space<vmem>>, %arg5: memref<16x4xf32, #tpu.memory_space<vmem>>, %arg6: memref<48x128xf32, #tpu.memory_space<vmem>>, %arg7: memref<48x4xf32, #tpu.memory_space<vmem>>) attributes {dimension_semantics = [#tpu.dimension_semantics<parallel>], iteration_bounds = array<i64: 2>, scalar_prefetch = 0 : i64, scratch_operands = 0 : i64, tpu.core_type = #tpu.core_type<tc>, window_params = [{transform_indices = @transform_0, window_bounds = array<i64: 48, 128>}, {pipeline_mode = #tpu.pipeline_mode<synchronous>, transform_indices = @transform_1, window_bounds = array<i64: 128, 16>}, {pipeline_mode = #tpu.pipeline_mode<synchronous>, transform_indices = @transform_2, window_bounds = array<i64: 16, 128>}, {pipeline_mode = #tpu.pipeline_mode<synchronous>, transform_indices = @transform_3, window_bounds = array<i64: 19, 16>}, {pipeline_mode = #tpu.pipeline_mode<synchronous>, transform_indices = @transform_4, window_bounds = array<i64: 16, 4>}, {transform_indices = @transform_5, window_bounds = array<i64: 48, 128>}, {transform_indices = @transform_6, window_bounds = array<i64: 48, 4>}]} {
    %c0 = arith.constant 0 : index
    %c0_0 = arith.constant 0 : index
    %0 = vector.load %arg1[%c0, %c0_0] : memref<48x128xf32, #tpu.memory_space<vmem>>, vector<48x128xf32>
    %c0_1 = arith.constant 0 : index
    %c0_2 = arith.constant 0 : index
    %1 = vector.load %arg4[%c0_1, %c0_2] : memref<19x16xf32, #tpu.memory_space<vmem>>, vector<16x16xf32>
    %c16 = arith.constant 16 : index
    %c0_3 = arith.constant 0 : index
    %2 = vector.load %arg4[%c16, %c0_3] : memref<19x16xf32, #tpu.memory_space<vmem>>, vector<1x16xf32>
    %c17 = arith.constant 17 : index
    %c0_4 = arith.constant 0 : index
    %3 = vector.load %arg4[%c17, %c0_4] : memref<19x16xf32, #tpu.memory_space<vmem>>, vector<1x16xf32>
    %c18 = arith.constant 18 : index
    %c0_5 = arith.constant 0 : index
    %4 = vector.load %arg4[%c18, %c0_5] : memref<19x16xf32, #tpu.memory_space<vmem>>, vector<1x16xf32>
    %c0_6 = arith.constant 0 : index
    %c0_7 = arith.constant 0 : index
    %5 = vector.load %arg2[%c0_6, %c0_7] : memref<128x16xf32, #tpu.memory_space<vmem>>, vector<128x16xf32>
    %cst = arith.constant dense<0.000000e+00> : vector<48x16xf32>
    %6 = tpu.matmul %0, %5, %cst {dimension_numbers = #tpu.dot_dimension_numbers<[1], [0], [0], [1], [0, 0, 1, 1], [], []>} : vector<48x128xf32>, vector<128x16xf32>, vector<48x16xf32> -> vector<48x16xf32>
    %7 = vector.broadcast %2 : vector<1x16xf32> to vector<48x16xf32>
    %8 = arith.addf %6, %7 : vector<48x16xf32>
    %cst_8 = arith.constant 0.000000e+00 : f32
    %9 = vector.broadcast %cst_8 : f32 to vector<48x16xf32>
    %10 = math.tanh %8 : vector<48x16xf32>
    %cst_9 = arith.constant 0.000000e+00 : f32
    %11 = vector.broadcast %cst_9 : f32 to vector<1x16xf32>
    %12 = arith.cmpf oeq, %4, %11 : vector<1x16xf32>
    %cst_10 = arith.constant 0.000000e+00 : f32
    %13 = vector.shape_cast %12 : vector<1x16xi1> to vector<1x16xi1>
    %14 = vector.broadcast %13 : vector<1x16xi1> to vector<48x16xi1>
    %15 = vector.broadcast %cst_10 : f32 to vector<48x16xf32>
    %16 = arith.select %14, %10, %15 : vector<48x16xi1>, vector<48x16xf32>
    %17 = arith.addf %9, %16 : vector<48x16xf32>
    %cst_11 = arith.constant dense<0.000000e+00> : vector<48x16xf32>
    %18 = tpu.matmul %16, %1, %cst_11 {dimension_numbers = #tpu.dot_dimension_numbers<[1], [0], [0], [1], [0, 0, 1, 1], [], []>} : vector<48x16xf32>, vector<16x16xf32>, vector<48x16xf32> -> vector<48x16xf32>
    %19 = arith.addf %8, %18 : vector<48x16xf32>
    %20 = math.tanh %19 : vector<48x16xf32>
    %cst_12 = arith.constant 1.000000e+00 : f32
    %21 = vector.broadcast %cst_12 : f32 to vector<1x16xf32>
    %22 = arith.cmpf oeq, %4, %21 : vector<1x16xf32>
    %cst_13 = arith.constant 0.000000e+00 : f32
    %23 = vector.shape_cast %22 : vector<1x16xi1> to vector<1x16xi1>
    %24 = vector.broadcast %23 : vector<1x16xi1> to vector<48x16xi1>
    %25 = vector.broadcast %cst_13 : f32 to vector<48x16xf32>
    %26 = arith.select %24, %20, %25 : vector<48x16xi1>, vector<48x16xf32>
    %27 = arith.addf %17, %26 : vector<48x16xf32>
    %cst_14 = arith.constant dense<0.000000e+00> : vector<48x16xf32>
    %28 = tpu.matmul %26, %1, %cst_14 {dimension_numbers = #tpu.dot_dimension_numbers<[1], [0], [0], [1], [0, 0, 1, 1], [], []>} : vector<48x16xf32>, vector<16x16xf32>, vector<48x16xf32> -> vector<48x16xf32>
    %29 = arith.addf %19, %28 : vector<48x16xf32>
    %30 = math.tanh %29 : vector<48x16xf32>
    %cst_15 = arith.constant 2.000000e+00 : f32
    %31 = vector.broadcast %cst_15 : f32 to vector<1x16xf32>
    %32 = arith.cmpf oeq, %4, %31 : vector<1x16xf32>
    %cst_16 = arith.constant 0.000000e+00 : f32
    %33 = vector.shape_cast %32 : vector<1x16xi1> to vector<1x16xi1>
    %34 = vector.broadcast %33 : vector<1x16xi1> to vector<48x16xi1>
    %35 = vector.broadcast %cst_16 : f32 to vector<48x16xf32>
    %36 = arith.select %34, %30, %35 : vector<48x16xi1>, vector<48x16xf32>
    %37 = arith.addf %27, %36 : vector<48x16xf32>
    %cst_17 = arith.constant dense<0.000000e+00> : vector<48x16xf32>
    %38 = tpu.matmul %36, %1, %cst_17 {dimension_numbers = #tpu.dot_dimension_numbers<[1], [0], [0], [1], [0, 0, 1, 1], [], []>} : vector<48x16xf32>, vector<16x16xf32>, vector<48x16xf32> -> vector<48x16xf32>
    %39 = arith.addf %29, %38 : vector<48x16xf32>
    %40 = math.tanh %39 : vector<48x16xf32>
    %cst_18 = arith.constant 3.000000e+00 : f32
    %41 = vector.broadcast %cst_18 : f32 to vector<1x16xf32>
    %42 = arith.cmpf oeq, %4, %41 : vector<1x16xf32>
    %cst_19 = arith.constant 0.000000e+00 : f32
    %43 = vector.shape_cast %42 : vector<1x16xi1> to vector<1x16xi1>
    %44 = vector.broadcast %43 : vector<1x16xi1> to vector<48x16xi1>
    %45 = vector.broadcast %cst_19 : f32 to vector<48x16xf32>
    %46 = arith.select %44, %40, %45 : vector<48x16xi1>, vector<48x16xf32>
    %47 = arith.addf %37, %46 : vector<48x16xf32>
    %c0_20 = arith.constant 0 : index
    %c0_21 = arith.constant 0 : index
    %48 = vector.load %arg3[%c0_20, %c0_21] : memref<16x128xf32, #tpu.memory_space<vmem>>, vector<16x128xf32>
    %cst_22 = arith.constant dense<0.000000e+00> : vector<48x128xf32>
    %49 = tpu.matmul %47, %48, %cst_22 {dimension_numbers = #tpu.dot_dimension_numbers<[1], [0], [0], [1], [0, 0, 1, 1], [], []>} : vector<48x16xf32>, vector<16x128xf32>, vector<48x128xf32> -> vector<48x128xf32>
    %50 = arith.addf %0, %49 : vector<48x128xf32>
    %c0_23 = arith.constant 0 : index
    %c0_24 = arith.constant 0 : index
    %51 = vector.load %arg6[%c0_23, %c0_24] : memref<48x128xf32, #tpu.memory_space<vmem>>, vector<48x128xf32>
    tpu.vector_store %arg6[%c0_23, %c0_24], %50 {strides = array<i32>} : memref<48x128xf32, #tpu.memory_space<vmem>>, vector<48x128xf32>,
    %52 = arith.mulf %47, %47 : vector<48x16xf32>
    %cst_25 = arith.constant 1.000000e+00 : f32
    %53 = vector.broadcast %cst_25 : f32 to vector<48x16xf32>
    %54 = arith.subf %53, %52 : vector<48x16xf32>
    %55 = vector.broadcast %3 : vector<1x16xf32> to vector<48x16xf32>
    %56 = arith.mulf %54, %55 : vector<48x16xf32>
    %cst_26 = arith.constant 1.000000e+00 : f32
    %57 = vector.broadcast %cst_26 : f32 to vector<48x16xf32>
    %58 = arith.addf %57, %56 : vector<48x16xf32>
    %59 = math.absf %58 : vector<48x16xf32>
    %cst_27 = arith.constant 9.99999993E-9 : f32
    %60 = vector.broadcast %cst_27 : f32 to vector<48x16xf32>
    %61 = arith.addf %59, %60 : vector<48x16xf32>
    %62 = math.log %61 : vector<48x16xf32>
    %c0_28 = arith.constant 0 : index
    %c0_29 = arith.constant 0 : index
    %63 = vector.load %arg5[%c0_28, %c0_29] : memref<16x4xf32, #tpu.memory_space<vmem>>, vector<16x4xf32>
    %cst_30 = arith.constant dense<0.000000e+00> : vector<48x4xf32>
    %64 = tpu.matmul %62, %63, %cst_30 {dimension_numbers = #tpu.dot_dimension_numbers<[1], [0], [0], [1], [0, 0, 1, 1], [], []>} : vector<48x16xf32>, vector<16x4xf32>, vector<48x4xf32> -> vector<48x4xf32>
    %c0_31 = arith.constant 0 : index
    %c0_32 = arith.constant 0 : index
    %65 = vector.load %arg7[%c0_31, %c0_32] : memref<48x4xf32, #tpu.memory_space<vmem>>, vector<48x4xf32>
    tpu.vector_store %arg7[%c0_31, %c0_32], %64 {strides = array<i32>} : memref<48x4xf32, #tpu.memory_space<vmem>>, vector<48x4xf32>,
    return
  }
  func.func @transform_0(%arg0: i32) -> (i32, i32) {
    %c0_i32 = arith.constant 0 : i32
    %c0_i32_0 = arith.constant 0 : i32
    return %arg0, %c0_i32 : i32, i32
  }
  func.func @transform_1(%arg0: i32) -> (i32, i32) {
    %c0_i32 = arith.constant 0 : i32
    %c0_i32_0 = arith.constant 0 : i32
    %c0_i32_1 = arith.constant 0 : i32
    return %c0_i32, %c0_i32_0 : i32, i32
  }
  func.func @transform_2(%arg0: i32) -> (i32, i32) {
    %c0_i32 = arith.constant 0 : i32
    %c0_i32_0 = arith.constant 0 : i32
    %c0_i32_1 = arith.constant 0 : i32
    return %c0_i32, %c0_i32_0 : i32, i32
  }
  func.func @transform_3(%arg0: i32) -> (i32, i32) {
    %c0_i32 = arith.constant 0 : i32
    %c0_i32_0 = arith.constant 0 : i32
    %c0_i32_1 = arith.constant 0 : i32
    return %c0_i32, %c0_i32_0 : i32, i32
  }
  func.func @transform_4(%arg0: i32) -> (i32, i32) {
    %c0_i32 = arith.constant 0 : i32
    %c0_i32_0 = arith.constant 0 : i32
    %c0_i32_1 = arith.constant 0 : i32
    return %c0_i32, %c0_i32_0 : i32, i32
  }
  func.func @transform_5(%arg0: i32) -> (i32, i32) {
    %c0_i32 = arith.constant 0 : i32
    %c0_i32_0 = arith.constant 0 : i32
    return %arg0, %c0_i32 : i32, i32
  }
  func.func @transform_6(%arg0: i32) -> (i32, i32) {
    %c0_i32 = arith.constant 0 : i32
    %c0_i32_0 = arith.constant 0 : i32
    return %arg0, %c0_i32 : i32, i32
  }
}

</mosaic_0001>

<llo_original>
// kernel: tile.29
$region0: #{tile.29}
  %s0 = inlined_call_operand.vmem [shape: f32[4,4], index: 0, kind: input, shape index: {}]
  %s1 = inlined_call_operand.vmem [shape: f32[1,16], index: 1, kind: output, shape index: {}]
  $region1: #{tile.29} parent=0
    #allocation0 [shape = 'u8[4096]{0}', space=vmem, size = 0x1000, scoped, tag = 'scoped mem for output reshape']
    #allocation1 [shape = 'u8[4096]{0}', space=vmem, size = 0x1000, scoped, tag = 'scoped mem for input reshape']
    %s3 = sshll.u32 1, 4
    %s4 = ssub.s32 %s3, 1
    %v5 = vld [vmem:[%s0] sm:%s4]
    %6 = vst [vmem:[#allocation1] sm:%s4] %v5
    %v7 = vld [vmem:[#allocation1] sm:$0x1]
    %vm8 = vcmask 31744
    %9 = vst.msk [vmem:[#allocation0] sm:$0x1] %vm8, %v7
    %s10 = scalar_lea.vmem [#allocation1], 3
    %v11 = vld [vmem:[%s10] sm:$0x1]
    %12 = vrot.lane.b32.xlu0 %v11, 12
    %v13 = vpop.permute.xlu0 %12
    %vm14 = vcmask 130144
    %15 = vst.msk [vmem:[#allocation0] sm:$0x1] %vm14, %v13
    %s16 = scalar_lea.vmem [#allocation1], 2
    %v17 = vld [vmem:[%s16] sm:$0x1]
    %18 = vrot.lane.b32.xlu0 %v17, 8
    %v19 = vpop.permute.xlu0 %18
    %vm20 = vcmask 97344
    %21 = vst.msk [vmem:[#allocation0] sm:$0x1] %vm20, %v19
    %s22 = scalar_lea.vmem [#allocation1], 1
    %v23 = vld [vmem:[%s22] sm:$0x1]
    %24 = vrot.lane.b32.xlu0 %v23, 4
    %v25 = vpop.permute.xlu0 %24
    %vm26 = vcmask 64544
    %27 = vst.msk [vmem:[#allocation0] sm:$0x1] %vm26, %v25
    %s29 = sshll.u32 1, 1
    %s30 = ssub.s32 %s29, 1
    %v32 = vld [vmem:[#allocation0] sm:%s30]
    %s33 = sshll.u32 1, 1
    %s34 = ssub.s32 %s33, 1
    %35 = vst [vmem:[%s1] sm:%s34] %v32

// kernel: tile.27
$region0: #{tile.27}
  #allocation0 [shape = 's32[1]{0}', space=sflag, size = 0x4, scoped, tag = 'scoped memory for tile.27']
  %s0 = inlined_call_operand.vmem [shape: f32[4], index: 0, kind: input, shape index: {}]
  %s1 = inlined_call_operand.vmem [shape: f32[4,4], index: 1, kind: output, shape index: {}]
  // Predicated region
  $region2: #{tile.27} parent=0 // pred_check
    _
  $region3: #{tile.27} parent=0 // pred_check_branch
    %3 = sbr.rel (0) target = $region5
  $region4: #{tile.27} parent=0 // pred_region
    _
  $region5: #{tile.27} parent=0 // pred_fallthru
    _
  %v4 = vld [vmem:[%s0] ss:$0 sm:$0xff]
  %5 = vst [vmem:[%s1] sm:$0xf] %v4

// kernel: normalizing_flow_forward.1
$region0: #{normalizing_flow_forward.1}
  #allocation0 [shape = 'u32[]', space=smem, size = 0x4, offset = 0x4, fixed_abs, tag = 'smem constant byte address 0x4 - core index']
  #allocation1 [shape = 'u32[144,128]{1,0:T(1,128)}', space=vmem, size = 0x12000, scoped, tag = 'internal scratch']
  %s0 = inlined_call_operand.vmem [shape: f32[96,128], index: 0, kind: input, shape index: {}]
  %s1 = inlined_call_operand.vmem [shape: f32[128,16], index: 1, kind: input, shape index: {}]
  %s2 = inlined_call_operand.vmem [shape: f32[16,128], index: 2, kind: input, shape index: {}]
  %s3 = inlined_call_operand.vmem [shape: f32[19,16], index: 3, kind: input, shape index: {}]
  %s4 = inlined_call_operand.vmem [shape: f32[16,4], index: 4, kind: input, shape index: {}]
  %s5 = inlined_call_operand.vmem [shape: f32[96,128], index: 5, kind: output, shape index: {0}]
  %s6 = inlined_call_operand.vmem [shape: f32[96,4], index: 6, kind: output, shape index: {1}]
  %7 = xla_tuple %s5, %s6
  %s8 = sld [smem:[#allocation0]]
  $region61: #{normalizing_flow_forward.1} parent=0
    _
  %s10 = ssub.s32 1, %s8
  %s11 = scalar_select 0, %s10, %s8
  loop: start=0, step=1, limit=4
  $region2: #{normalizing_flow_forward.1} parent=0 // loop_pre_header
    _
  $region3: #{normalizing_flow_forward.1} parent=0 // loop_header
    %s13 = sphi 0, %s17
    %p14 = scmp.ge.s32.totalorder %s13, 4
    %s23 = sphi 0, %s25
    %s26 = sphi 0, %s23
    %s27 = sphi 0, %s26
    %s43 = sphi 0, %s27
    %s47 = sphi 0, %s47
    %s49 = sphi 0, %s47
    %s50 = sphi 0, %s49
    %s64 = sphi 0, %s50
    %s68 = sphi 0, %s68
    %s70 = sphi 0, %s68
    %s71 = sphi 0, %s70
    %s85 = sphi 0, %s71
    %s89 = sphi 0, %s89
    %s91 = sphi 0, %s89
    %s92 = sphi 0, %s91
    %s106 = sphi 0, %s92
    %s110 = sphi 0, %s110
    %s112 = sphi 0, %s110
    %s113 = sphi 0, %s112
    %s127 = sphi 0, %s113
    %s133 = sphi 0, %s135
    %s136 = sphi 0, %s133
    %s137 = sphi 0, %s136
    %s153 = sphi 0, %s137
    %s159 = sphi 0, %s161
    %s162 = sphi 0, %s159
    %s163 = sphi 0, %s162
    %s179 = sphi 0, %s163
  $region4: #{normalizing_flow_forward.1} parent=0 // loop_header_branch
    %16 = sbr.rel (%p14) target = $region8
  $region5: #{normalizing_flow_forward.1} parent=0 // loop_body
    %s18 = ssub.s32 %s13, 1
    %s19 = ssub.s32 %s13, 2
    %s20 = sadd.s32 %s13, 1
    %s21 = ssub.s32 %s13, %s20
    %p22 = scmp.eq.s32.totalorder %s21, 0
    %s24 = sadd.s32 %s23, 1
    %s25 = scalar_select %p22, %s23, %s24
    %p28 = pneg %p22
    %p29 = scmp.eq.s32.totalorder %s13, 1
    %p30 = por %p28, %p29
    %p31 = scmp.ne.s32.totalorder %s23, %s26
    %p32 = scmp.eq.s32.totalorder %s13, 0
    %p33 = por %p31, %p32
    %p34 = scmp.ne.s32.totalorder %s23, %s26
    %p35 = scmp.eq.s32.totalorder %s18, 1
    %p36 = por %p34, %p35
    %p37 = scmp.ne.s32.totalorder %s26, %s27
    %p38 = scmp.eq.s32.totalorder %s18, 0
    %p39 = por %p37, %p38
    %p40 = scmp.ne.s32.totalorder %s26, %s27
    %p41 = scmp.eq.s32.totalorder %s19, 1
    %p42 = por %p40, %p41
    %p44 = scmp.ne.s32.totalorder %s27, %s43
    %p45 = scmp.eq.s32.totalorder %s19, 0
    %p46 = por %p44, %p45
    %s48 = sadd.s32 %s47, 1
    %p51 = scmp.eq.s32.totalorder %s13, 1
    %p52 = scmp.ne.s32.totalorder %s47, %s49
    %p53 = scmp.eq.s32.totalorder %s13, 0
    %p54 = por %p52, %p53
    %p55 = scmp.ne.s32.totalorder %s47, %s49
    %p56 = scmp.eq.s32.totalorder %s18, 1
    %p57 = por %p55, %p56
    %p58 = scmp.ne.s32.totalorder %s49, %s50
    %p59 = scmp.eq.s32.totalorder %s18, 0
    %p60 = por %p58, %p59
    %p61 = scmp.ne.s32.totalorder %s49, %s50
    %p62 = scmp.eq.s32.totalorder %s19, 1
    %p63 = por %p61, %p62
    %p65 = scmp.ne.s32.totalorder %s50, %s64
    %p66 = scmp.eq.s32.totalorder %s19, 0
    %p67 = por %p65, %p66
    %s69 = sadd.s32 %s68, 1
    %p72 = scmp.eq.s32.totalorder %s13, 1
    %p73 = scmp.ne.s32.totalorder %s68, %s70
    %p74 = scmp.eq.s32.totalorder %s13, 0
    %p75 = por %p73, %p74
    %p76 = scmp.ne.s32.totalorder %s68, %s70
    %p77 = scmp.eq.s32.totalorder %s18, 1
    %p78 = por %p76, %p77
    %p79 = scmp.ne.s32.totalorder %s70, %s71
    %p80 = scmp.eq.s32.totalorder %s18, 0
    %p81 = por %p79, %p80
    %p82 = scmp.ne.s32.totalorder %s70, %s71
    %p83 = scmp.eq.s32.totalorder %s19, 1
    %p84 = por %p82, %p83
    %p86 = scmp.ne.s32.totalorder %s71, %s85
    %p87 = scmp.eq.s32.totalorder %s19, 0
    %p88 = por %p86, %p87
    %s90 = sadd.s32 %s89, 1
    %p93 = scmp.eq.s32.totalorder %s13, 1
    %p94 = scmp.ne.s32.totalorder %s89, %s91
    %p95 = scmp.eq.s32.totalorder %s13, 0
    %p96 = por %p94, %p95
    %p97 = scmp.ne.s32.totalorder %s89, %s91
    %p98 = scmp.eq.s32.totalorder %s18, 1
    %p99 = por %p97, %p98
    %p100 = scmp.ne.s32.totalorder %s91, %s92
    %p101 = scmp.eq.s32.totalorder %s18, 0
    %p102 = por %p100, %p101
    %p103 = scmp.ne.s32.totalorder %s91, %s92
    %p104 = scmp.eq.s32.totalorder %s19, 1
    %p105 = por %p103, %p104
    %p107 = scmp.ne.s32.totalorder %s92, %s106
    %p108 = scmp.eq.s32.totalorder %s19, 0
    %p109 = por %p107, %p108
    %s111 = sadd.s32 %s110, 1
    %p114 = scmp.eq.s32.totalorder %s13, 1
    %p115 = scmp.ne.s32.totalorder %s110, %s112
    %p116 = scmp.eq.s32.totalorder %s13, 0
    %p117 = por %p115, %p116
    %p118 = scmp.ne.s32.totalorder %s110, %s112
    %p119 = scmp.eq.s32.totalorder %s18, 1
    %p120 = por %p118, %p119
    %p121 = scmp.ne.s32.totalorder %s112, %s113
    %p122 = scmp.eq.s32.totalorder %s18, 0
    %p123 = por %p121, %p122
    %p124 = scmp.ne.s32.totalorder %s112, %s113
    %p125 = scmp.eq.s32.totalorder %s19, 1
    %p126 = por %p124, %p125
    %p128 = scmp.ne.s32.totalorder %s113, %s127
    %p129 = scmp.eq.s32.totalorder %s19, 0
    %p130 = por %p128, %p129
    %s131 = ssub.s32 %s13, %s20
    %p132 = scmp.eq.s32.totalorder %s131, 0
    %s134 = sadd.s32 %s133, 1
    %s135 = scalar_select %p132, %s133, %s134
    %p138 = pneg %p132
    %p139 = scmp.eq.s32.totalorder %s13, 1
    %p140 = por %p138, %p139
    %p141 = scmp.ne.s32.totalorder %s133, %s136
    %p142 = scmp.eq.s32.totalorder %s13, 0
    %p143 = por %p141, %p142
    %p144 = scmp.ne.s32.totalorder %s133, %s136
    %p145 = scmp.eq.s32.totalorder %s18, 1
    %p146 = por %p144, %p145
    %p147 = scmp.ne.s32.totalorder %s136, %s137
    %p148 = scmp.eq.s32.totalorder %s18, 0
    %p149 = por %p147, %p148
    %p150 = scmp.ne.s32.totalorder %s136, %s137
    %p151 = scmp.eq.s32.totalorder %s19, 1
    %p152 = por %p150, %p151
    %p154 = scmp.ne.s32.totalorder %s137, %s153
    %p155 = scmp.eq.s32.totalorder %s19, 0
    %p156 = por %p154, %p155
    %s157 = ssub.s32 %s13, %s20
    %p158 = scmp.eq.s32.totalorder %s157, 0
    %s160 = sadd.s32 %s159, 1
    %s161 = scalar_select %p158, %s159, %s160
    %p164 = pneg %p158
    %p165 = scmp.eq.s32.totalorder %s13, 1
    %p166 = por %p164, %p165
    %p167 = scmp.ne.s32.totalorder %s159, %s162
    %p168 = scmp.eq.s32.totalorder %s13, 0
    %p169 = por %p167, %p168
    %p170 = scmp.ne.s32.totalorder %s159, %s162
    %p171 = scmp.eq.s32.totalorder %s18, 1
    %p172 = por %p170, %p171
    %p173 = scmp.ne.s32.totalorder %s162, %s163
    %p174 = scmp.eq.s32.totalorder %s18, 0
    %p175 = por %p173, %p174
    %p176 = scmp.ne.s32.totalorder %s162, %s163
    %p177 = scmp.eq.s32.totalorder %s19, 1
    %p178 = por %p176, %p177
    %p180 = scmp.ne.s32.totalorder %s163, %s179
    %p181 = scmp.eq.s32.totalorder %s19, 0
    %p182 = por %p180, %p181
    %p183 = scmp.le.s32.totalorder 1, %s13
    %p184 = scmp.lt.s32.totalorder %s13, 3
    %p185 = pnand %p183, %p184
    %p186 = pneg %p185
    // Predicated region
    $region9: #{normalizing_flow_forward.1} parent=5 // pred_check
      _
    $region10: #{normalizing_flow_forward.1} parent=5 // pred_check_branch
      %188 = sbr.rel (%p185) target = $region12
    $region11: #{normalizing_flow_forward.1} parent=5 // pred_region
      %s189 = ssub.s32 %s13, 1
      // Predicated region
      $region13: #{normalizing_flow_forward.1} parent=11 // pred_check
        %p190 = pneg %p60
      $region14: #{normalizing_flow_forward.1} parent=11 // pred_check_branch
        %192 = sbr.rel (%p190) target = $region16
      $region15: #{normalizing_flow_forward.1} parent=11 // pred_region
        _
      $region16: #{normalizing_flow_forward.1} parent=11 // pred_fallthru
        _
      // Predicated region
      $region17: #{normalizing_flow_forward.1} parent=11 // pred_check
        %p193 = pneg %p81
      $region18: #{normalizing_flow_forward.1} parent=11 // pred_check_branch
        %195 = sbr.rel (%p193) target = $region20
      $region19: #{normalizing_flow_forward.1} parent=11 // pred_region
        _
      $region20: #{normalizing_flow_forward.1} parent=11 // pred_fallthru
        _
      // Predicated region
      $region21: #{normalizing_flow_forward.1} parent=11 // pred_check
        %p196 = pneg %p102
      $region22: #{normalizing_flow_forward.1} parent=11 // pred_check_branch
        %198 = sbr.rel (%p196) target = $region24
      $region23: #{normalizing_flow_forward.1} parent=11 // pred_region
        _
      $region24: #{normalizing_flow_forward.1} parent=11 // pred_fallthru
        _
      // Predicated region
      $region25: #{normalizing_flow_forward.1} parent=11 // pred_check
        %p199 = pneg %p123
      $region26: #{normalizing_flow_forward.1} parent=11 // pred_check_branch
        %201 = sbr.rel (%p199) target = $region28
      $region27: #{normalizing_flow_forward.1} parent=11 // pred_region
        _
      $region28: #{normalizing_flow_forward.1} parent=11 // pred_fallthru
        _
    $region12: #{normalizing_flow_forward.1} parent=5 // pred_fallthru
      _
    %p202 = scmp.lt.s32.totalorder %s13, 2
    // Predicated region
    $region29: #{normalizing_flow_forward.1} parent=5 // pred_check
      %p203 = pneg %p202
    $region30: #{normalizing_flow_forward.1} parent=5 // pred_check_branch
      %205 = sbr.rel (%p203) target = $region32
    $region31: #{normalizing_flow_forward.1} parent=5 // pred_region
      // Predicated region
      $region33: #{normalizing_flow_forward.1} parent=31 // pred_check
        %p206 = pneg %p33
      $region34: #{normalizing_flow_forward.1} parent=31 // pred_check_branch
        %208 = sbr.rel (%p206) target = $region36
      $region35: #{normalizing_flow_forward.1} parent=31 // pred_region
        %s209 = smul.u32 6, %s13
        %p210 = scmp.lt.s32.totalorder %s209, 11
        %s211 = scalar_select %p210, %s209, 11
        %s212 = smul.addr %s211, 8
        %s213 = scalar_lea.vmem %s0, %s212
        %s214 = smul.u32 6, %s13
      $region36: #{normalizing_flow_forward.1} parent=31 // pred_fallthru
        _
    $region32: #{normalizing_flow_forward.1} parent=5 // pred_fallthru
      _
    %p215 = scmp.le.s32.totalorder 1, %s13
    %p216 = scmp.lt.s32.totalorder %s13, 3
    %p217 = pnand %p215, %p216
    %p218 = pneg %p217
    // Predicated region
    $region37: #{normalizing_flow_forward.1} parent=5 // pred_check
      _
    $region38: #{normalizing_flow_forward.1} parent=5 // pred_check_branch
      %220 = sbr.rel (%p217) target = $region40
    $region39: #{normalizing_flow_forward.1} parent=5 // pred_region
      %s221 = ssub.s32 %s13, 1
      %s222 = smul.u32 6, %s18
      %p223 = scmp.lt.s32.totalorder %s222, 11
      %s224 = scalar_select %p223, %s222, 11
      %s225 = smul.addr %s224, 8
      %s226 = scalar_lea.vmem %s0, %s225
      %p227 = pneg %p39
      %p228 = pneg %p36
      %p229 = pneg %p60
      %p230 = pneg %p57
      %p231 = pneg %p81
      %p232 = pneg %p78
      %p233 = pneg %p102
      %p234 = pneg %p99
      %p235 = pneg %p123
      %p236 = pneg %p120
      %p237 = pneg %p149
      %p238 = pneg %p146
      %s239 = smul.u32 6, %s18
      %p240 = scmp.lt.s32.totalorder %s239, 11
      %s241 = scalar_select %p240, %s239, 11
      %s242 = smul.addr %s241, 8
      %s243 = scalar_lea.vmem %s5, %s242
      %p244 = pneg %p175
      %p245 = pneg %p172
      %s246 = smul.u32 6, %s18
      %p247 = scmp.lt.s32.totalorder %s246, 11
      %s248 = scalar_select %p247, %s246, 11
      %s249 = smul.addr %s248, 8
      %s250 = scalar_lea.vmem %s6, %s249
      %s251 = smul.u32 6, %s18
      %p252 = scmp.lt.s32.totalorder %s251, 11
      %s253 = scalar_select %p252, %s251, 11
      %s254 = smul.addr %s253, 8
      %s255 = scalar_lea.vmem %s0, %s254
      %s256 = smul.u32 6, %s18
      %s257 = smul.u32 6, %s18
      %p258 = scmp.lt.s32.totalorder %s257, 11
      %s259 = scalar_select %p258, %s257, 11
      %s260 = smul.addr %s259, 8
      %s261 = scalar_lea.vmem %s5, %s260
      %s262 = smul.u32 6, %s18
      %s263 = smul.u32 6, %s18
      %p264 = scmp.lt.s32.totalorder %s263, 11
      %s265 = scalar_select %p264, %s263, 11
      %s266 = smul.addr %s265, 8
      %s267 = scalar_lea.vmem %s6, %s266
      %s268 = smul.u32 6, %s18
      %v269 = vld [vmem:[%s255] sm:$0xff]
      %v270 = vld [vmem:[%s255 + $0x8] sm:$0xff]
      %v271 = vld [vmem:[%s255 + $0x10] sm:$0xff]
      %v272 = vld [vmem:[%s255 + $0x18] sm:$0xff]
      %v273 = vld [vmem:[%s255 + $0x20] sm:$0xff]
      %v274 = vld [vmem:[%s255 + $0x28] sm:$0xff]
      %v275 = vld [vmem:[%s3] sm:$0xff]
      %v276 = vld [vmem:[%s3 + $0x8] sm:$0xff]
      %v277 = vld [vmem:[%s3 + $0x10] sm:$0x1]
      %v278 = vld [vmem:[%s3 + $0x11] sm:$0x1]
      %v279 = vld [vmem:[%s3 + $0x12] sm:$0x1]
      %v280 = vld [vmem:[%s1] sm:$0xff]
      %v281 = vld [vmem:[%s1 + $0x8] sm:$0xff]
      %v282 = vld [vmem:[%s1 + $0x10] sm:$0xff]
      %v283 = vld [vmem:[%s1 + $0x18] sm:$0xff]
      %v284 = vld [vmem:[%s1 + $0x20] sm:$0xff]
      %v285 = vld [vmem:[%s1 + $0x28] sm:$0xff]
      %v286 = vld [vmem:[%s1 + $0x30] sm:$0xff]
      %v287 = vld [vmem:[%s1 + $0x38] sm:$0xff]
      %v288 = vld [vmem:[%s1 + $0x40] sm:$0xff]
      %v289 = vld [vmem:[%s1 + $0x48] sm:$0xff]
      %v290 = vld [vmem:[%s1 + $0x50] sm:$0xff]
      %v291 = vld [vmem:[%s1 + $0x58] sm:$0xff]
      %v292 = vld [vmem:[%s1 + $0x60] sm:$0xff]
      %v293 = vld [vmem:[%s1 + $0x68] sm:$0xff]
      %v294 = vld [vmem:[%s1 + $0x70] sm:$0xff]
      %v295 = vld [vmem:[%s1 + $0x78] sm:$0xff]
      %v296 = vlaneseq
      %v297 = vshrl.u32 %v296, 7
      %v298 = vsub.s32 0, %v297
      %v299 = vrot.slane %v277, %v298
      %300 = vmatprep.subr.mxu0 0.0
      %301 = vmatpush1.msra.mxu0 %v295
      %302 = vmatprep.subr.mxu0 0.0
      %303 = vmatpush1.msra.mxu0 %v294
      %304 = vmatprep.subr.mxu0 0.0
      %305 = vmatpush1.msra.mxu0 %v293
      %306 = vmatprep.subr.mxu0 0.0
      %307 = vmatpush1.msra.mxu0 %v292
      %308 = vmatprep.subr.mxu0 0.0
      %309 = vmatpush1.msra.mxu0 %v291
      %310 = vmatprep.subr.mxu0 0.0
      %311 = vmatpush1.msra.mxu0 %v290
      %312 = vmatprep.subr.mxu0 0.0
      %313 = vmatpush1.msra.mxu0 %v289
      %314 = vmatprep.subr.mxu0 0.0
      %315 = vmatpush1.msra.mxu0 %v288
      %316 = vmatprep.subr.mxu0 0.0
      %317 = vmatpush1.msra.mxu0 %v287
      %318 = vmatprep.subr.mxu0 0.0
      %319 = vmatpush1.msra.mxu0 %v286
      %320 = vmatprep.subr.mxu0 0.0
      %321 = vmatpush1.msra.mxu0 %v285
      %322 = vmatprep.subr.mxu0 0.0
      %323 = vmatpush1.msra.mxu0 %v284
      %324 = vmatprep.subr.mxu0 0.0
      %325 = vmatpush1.msra.mxu0 %v283
      %326 = vmatprep.subr.mxu0 0.0
      %327 = vmatpush1.msra.mxu0 %v282
      %328 = vmatprep.subr.mxu0 0.0
      %329 = vmatpush1.msra.mxu0 %v281
      %330 = vmatprep.subr.mxu0 0.0
      %331 = vmatpush1.msra.mxu0 %v280
      %332 = vmatprep.subr.mxu0 0.0
      %333 = vmatpush2.msra.mxu0 0.0
      %334 = vmatprep.subr.mxu0 0.0
      %335 = vmatpush2.msra.mxu0 0.0
      %336 = vmatprep.subr.mxu0 0.0
      %337 = vmatpush2.msra.mxu0 0.0
      %338 = vmatprep.subr.mxu0 0.0
      %339 = vmatpush2.msra.mxu0 0.0
      %340 = vmatprep.subr.mxu0 0.0
      %341 = vmatpush2.msra.mxu0 0.0
      %342 = vmatprep.subr.mxu0 0.0
      %343 = vmatpush2.msra.mxu0 0.0
      %344 = vmatprep.subr.mxu0 0.0
      %345 = vmatpush2.msra.mxu0 0.0
      %346 = vmatprep.subr.mxu0 0.0
      %347 = vmatpush2.msra.mxu0 0.0
      %348 = vmatprep.subr.mxu0 0.0
      %349 = vmatpush2.msra.mxu0 0.0
      %350 = vmatprep.subr.mxu0 0.0
      %351 = vmatpush2.msra.mxu0 0.0
      %352 = vmatprep.subr.mxu0 0.0
      %353 = vmatpush2.msra.mxu0 0.0
      %354 = vmatprep.subr.mxu0 0.0
      %355 = vmatpush2.msra.mxu0 0.0
      %356 = vmatprep.subr.mxu0 0.0
      %357 = vmatpush2.msra.mxu0 0.0
      %358 = vmatprep.subr.mxu0 0.0
      %359 = vmatpush2.msra.mxu0 0.0
      %360 = vmatprep.subr.mxu0 0.0
      %361 = vmatpush2.msra.mxu0 0.0
      %362 = vmatprep.subr.mxu0 0.0
      %363 = vmatpush2.msra.mxu0 0.0
      %364 = vmatprep.mubr.f32.mxu0 0.0
      %365 = vmatmul.mubr.f32.gmra.mxu0 %v269
      %v366 = vpop.f32.mrf.mxu0
      %v367 = vadd.f32 %v299, %v366
      %v368 = vpop.f32.mrf.mxu0
      %369 = vmatprep.mubr.f32.mxu0 0.0
      %370 = vmatmul.mubr.f32.gmra.mxu0 %v270
      %v371 = vpop.f32.mrf.mxu0
      %v372 = vadd.f32 %v299, %v371
      %v373 = vpop.f32.mrf.mxu0
      %374 = vmatprep.mubr.f32.mxu0 0.0
      %375 = vmatmul.mubr.f32.gmra.mxu0 %v271
      %v376 = vpop.f32.mrf.mxu0
      %v377 = vadd.f32 %v299, %v376
      %v378 = vpop.f32.mrf.mxu0
      %379 = vmatprep.mubr.f32.mxu0 0.0
      %380 = vmatmul.mubr.f32.gmra.mxu0 %v272
      %v381 = vpop.f32.mrf.mxu0
      %v382 = vadd.f32 %v299, %v381
      %v383 = vpop.f32.mrf.mxu0
      %384 = vmatprep.mubr.f32.mxu0 0.0
      %385 = vmatmul.mubr.f32.gmra.mxu0 %v273
      %v386 = vpop.f32.mrf.mxu0
      %v387 = vadd.f32 %v299, %v386
      %v388 = vpop.f32.mrf.mxu0
      %389 = vmatprep.mubr.f32.mxu0 0.0
      %390 = vmatmul.mubr.f32.gmra.mxu0 %v274
      %v391 = vpop.f32.mrf.mxu0
      %v392 = vadd.f32 %v299, %v391
      %v393 = vpop.f32.mrf.mxu0
      %394 = vdwg.mxu0
      %v395 = vtanh.pop %v367
      %v396 = vtanh.pop %v372
      %v397 = vtanh.pop %v377
      %v398 = vtanh.pop %v382
      %v399 = vtanh.pop %v387
      %v400 = vtanh.pop %v392
      %vm401 = vcmp.eq.f32.partialorder %v279, 0.0
      %v402 = vsel %vm401, 1, 0
      %v403 = vlaneseq
      %v404 = vshrl.u32 %v403, 7
      %v405 = vsub.s32 0, %v404
      %v406 = vrot.slane %v402, %v405
      %vm407 = vcmp.eq.s32.totalorder %v406, 1
      %v408 = vsel %vm407, %v395, 0.0
      %v409 = vsel %vm407, %v396, 0.0
      %v410 = vsel %vm407, %v397, 0.0
      %v411 = vsel %vm407, %v398, 0.0
      %v412 = vsel %vm407, %v399, 0.0
      %v413 = vsel %vm407, %v400, 0.0
      %v414 = vadd.f32 %v408, 0.0
      %v415 = vadd.f32 %v409, 0.0
      %v416 = vadd.f32 %v410, 0.0
      %v417 = vadd.f32 %v411, 0.0
      %v418 = vadd.f32 %v412, 0.0
      %v419 = vadd.f32 %v413, 0.0
      %vm420 = vcmask 130048
      %v422 = vsel %vm420, %v408, 0
      %v425 = vsel %vm420, %v409, 0
      %v428 = vsel %vm420, %v410, 0
      %v431 = vsel %vm420, %v411, 0
      %v434 = vsel %vm420, %v412, 0
      %v437 = vsel %vm420, %v413, 0
      %439 = vmatprep.subr.mxu0 0.0
      %440 = vmatpush1.msra.mxu0 0.0
      %441 = vmatprep.subr.mxu0 0.0
      %442 = vmatpush1.msra.mxu0 0.0
      %443 = vmatprep.subr.mxu0 0.0
      %444 = vmatpush1.msra.mxu0 0.0
      %445 = vmatprep.subr.mxu0 0.0
      %446 = vmatpush1.msra.mxu0 0.0
      %447 = vmatprep.subr.mxu0 0.0
      %448 = vmatpush1.msra.mxu0 0.0
      %449 = vmatprep.subr.mxu0 0.0
      %450 = vmatpush1.msra.mxu0 0.0
      %451 = vmatprep.subr.mxu0 0.0
      %452 = vmatpush1.msra.mxu0 0.0
      %453 = vmatprep.subr.mxu0 0.0
      %454 = vmatpush1.msra.mxu0 0.0
      %455 = vmatprep.subr.mxu0 0.0
      %456 = vmatpush1.msra.mxu0 0.0
      %457 = vmatprep.subr.mxu0 0.0
      %458 = vmatpush1.msra.mxu0 0.0
      %459 = vmatprep.subr.mxu0 0.0
      %460 = vmatpush1.msra.mxu0 0.0
      %461 = vmatprep.subr.mxu0 0.0
      %462 = vmatpush1.msra.mxu0 0.0
      %463 = vmatprep.subr.mxu0 0.0
      %464 = vmatpush1.msra.mxu0 0.0
      %465 = vmatprep.subr.mxu0 0.0
      %466 = vmatpush1.msra.mxu0 0.0
      %467 = vmatprep.subr.mxu0 0.0
      %468 = vmatpush1.msra.mxu0 %v276
      %469 = vmatprep.subr.mxu0 0.0
      %470 = vmatpush1.msra.mxu0 %v275
      %471 = vmatprep.subr.mxu0 0.0
      %472 = vmatpush2.msra.mxu0 0.0
      %473 = vmatprep.subr.mxu0 0.0
      %474 = vmatpush2.msra.mxu0 0.0
      %475 = vmatprep.subr.mxu0 0.0
      %476 = vmatpush2.msra.mxu0 0.0
      %477 = vmatprep.subr.mxu0 0.0
      %478 = vmatpush2.msra.mxu0 0.0
      %479 = vmatprep.subr.mxu0 0.0
      %480 = vmatpush2.msra.mxu0 0.0
      %481 = vmatprep.subr.mxu0 0.0
      %482 = vmatpush2.msra.mxu0 0.0
      %483 = vmatprep.subr.mxu0 0.0
      %484 = vmatpush2.msra.mxu0 0.0
      %485 = vmatprep.subr.mxu0 0.0
      %486 = vmatpush2.msra.mxu0 0.0
      %487 = vmatprep.subr.mxu0 0.0
      %488 = vmatpush2.msra.mxu0 0.0
      %489 = vmatprep.subr.mxu0 0.0
      %490 = vmatpush2.msra.mxu0 0.0
      %491 = vmatprep.subr.mxu0 0.0
      %492 = vmatpush2.msra.mxu0 0.0
      %493 = vmatprep.subr.mxu0 0.0
      %494 = vmatpush2.msra.mxu0 0.0
      %495 = vmatprep.subr.mxu0 0.0
      %496 = vmatpush2.msra.mxu0 0.0
      %497 = vmatprep.subr.mxu0 0.0
      %498 = vmatpush2.msra.mxu0 0.0
      %499 = vmatprep.subr.mxu0 0.0
      %500 = vmatpush2.msra.mxu0 0.0
      %501 = vmatprep.subr.mxu0 0.0
      %502 = vmatpush2.msra.mxu0 0.0
      %503 = vmatprep.mubr.f32.mxu0 0.0
      %504 = vmatmul.mubr.f32.gmra.mxu0 %v422
      %v505 = vpop.f32.mrf.mxu0
      %v506 = vadd.f32 0.0, %v505
      %v507 = vpop.f32.mrf.mxu0
      %508 = vmatprep.mubr.f32.mxu0 0.0
      %509 = vmatmul.mubr.f32.gmra.mxu0 %v425
      %v510 = vpop.f32.mrf.mxu0
      %v511 = vadd.f32 0.0, %v510
      %v512 = vpop.f32.mrf.mxu0
      %513 = vmatprep.mubr.f32.mxu0 0.0
      %514 = vmatmul.mubr.f32.gmra.mxu0 %v428
      %v515 = vpop.f32.mrf.mxu0
      %v516 = vadd.f32 0.0, %v515
      %v517 = vpop.f32.mrf.mxu0
      %518 = vmatprep.mubr.f32.mxu0 0.0
      %519 = vmatmul.mubr.f32.gmra.mxu0 %v431
      %v520 = vpop.f32.mrf.mxu0
      %v521 = vadd.f32 0.0, %v520
      %v522 = vpop.f32.mrf.mxu0
      %523 = vmatprep.mubr.f32.mxu0 0.0
      %524 = vmatmul.mubr.f32.gmra.mxu0 %v434
      %v525 = vpop.f32.mrf.mxu0
      %v526 = vadd.f32 0.0, %v525
      %v527 = vpop.f32.mrf.mxu0
      %528 = vmatprep.mubr.f32.mxu0 0.0
      %529 = vmatmul.mubr.f32.gmra.mxu0 %v437
      %v530 = vpop.f32.mrf.mxu0
      %v531 = vadd.f32 0.0, %v530
      %v532 = vpop.f32.mrf.mxu0
      %533 = vdwg.mxu0
      %v534 = vadd.f32 %v367, %v506
      %v535 = vadd.f32 %v372, %v511
      %v536 = vadd.f32 %v377, %v516
      %v537 = vadd.f32 %v382, %v521
      %v538 = vadd.f32 %v387, %v526
      %v539 = vadd.f32 %v392, %v531
      %v540 = vtanh.pop %v534
      %v541 = vtanh.pop %v535
      %v542 = vtanh.pop %v536
      %v543 = vtanh.pop %v537
      %v544 = vtanh.pop %v538
      %v545 = vtanh.pop %v539
      %vm546 = vcmp.eq.f32.partialorder %v279, 1.0
      %v547 = vsel %vm546, 1, 0
      %v548 = vlaneseq
      %v549 = vshrl.u32 %v548, 7
      %v550 = vsub.s32 0, %v549
      %v551 = vrot.slane %v547, %v550
      %vm552 = vcmp.eq.s32.totalorder %v551, 1
      %v553 = vsel %vm552, %v540, 0.0
      %v554 = vsel %vm552, %v541, 0.0
      %v555 = vsel %vm552, %v542, 0.0
      %v556 = vsel %vm552, %v543, 0.0
      %v557 = vsel %vm552, %v544, 0.0
      %v558 = vsel %vm552, %v545, 0.0
      %v559 = vadd.f32 %v414, %v553
      %v560 = vadd.f32 %v415, %v554
      %v561 = vadd.f32 %v416, %v555
      %v562 = vadd.f32 %v417, %v556
      %v563 = vadd.f32 %v418, %v557
      %v564 = vadd.f32 %v419, %v558
      %v566 = vsel %vm420, %v553, 0
      %v569 = vsel %vm420, %v554, 0
      %v572 = vsel %vm420, %v555, 0
      %v575 = vsel %vm420, %v556, 0
      %v578 = vsel %vm420, %v557, 0
      %v581 = vsel %vm420, %v558, 0
      %583 = vmatprep.subr.mxu0 0.0
      %584 = vmatpush1.msra.mxu0 0.0
      %585 = vmatprep.subr.mxu0 0.0
      %586 = vmatpush1.msra.mxu0 0.0
      %587 = vmatprep.subr.mxu0 0.0
      %588 = vmatpush1.msra.mxu0 0.0
      %589 = vmatprep.subr.mxu0 0.0
      %590 = vmatpush1.msra.mxu0 0.0
      %591 = vmatprep.subr.mxu0 0.0
      %592 = vmatpush1.msra.mxu0 0.0
      %593 = vmatprep.subr.mxu0 0.0
      %594 = vmatpush1.msra.mxu0 0.0
      %595 = vmatprep.subr.mxu0 0.0
      %596 = vmatpush1.msra.mxu0 0.0
      %597 = vmatprep.subr.mxu0 0.0
      %598 = vmatpush1.msra.mxu0 0.0
      %599 = vmatprep.subr.mxu0 0.0
      %600 = vmatpush1.msra.mxu0 0.0
      %601 = vmatprep.subr.mxu0 0.0
      %602 = vmatpush1.msra.mxu0 0.0
      %603 = vmatprep.subr.mxu0 0.0
      %604 = vmatpush1.msra.mxu0 0.0
      %605 = vmatprep.subr.mxu0 0.0
      %606 = vmatpush1.msra.mxu0 0.0
      %607 = vmatprep.subr.mxu0 0.0
      %608 = vmatpush1.msra.mxu0 0.0
      %609 = vmatprep.subr.mxu0 0.0
      %610 = vmatpush1.msra.mxu0 0.0
      %611 = vmatprep.subr.mxu0 0.0
      %612 = vmatpush1.msra.mxu0 %v276
      %613 = vmatprep.subr.mxu0 0.0
      %614 = vmatpush1.msra.mxu0 %v275
      %615 = vmatprep.subr.mxu0 0.0
      %616 = vmatpush2.msra.mxu0 0.0
      %617 = vmatprep.subr.mxu0 0.0
      %618 = vmatpush2.msra.mxu0 0.0
      %619 = vmatprep.subr.mxu0 0.0
      %620 = vmatpush2.msra.mxu0 0.0
      %621 = vmatprep.subr.mxu0 0.0
      %622 = vmatpush2.msra.mxu0 0.0
      %623 = vmatprep.subr.mxu0 0.0
      %624 = vmatpush2.msra.mxu0 0.0
      %625 = vmatprep.subr.mxu0 0.0
      %626 = vmatpush2.msra.mxu0 0.0
      %627 = vmatprep.subr.mxu0 0.0
      %628 = vmatpush2.msra.mxu0 0.0
      %629 = vmatprep.subr.mxu0 0.0
      %630 = vmatpush2.msra.mxu0 0.0
      %631 = vmatprep.subr.mxu0 0.0
      %632 = vmatpush2.msra.mxu0 0.0
      %633 = vmatprep.subr.mxu0 0.0
      %634 = vmatpush2.msra.mxu0 0.0
      %635 = vmatprep.subr.mxu0 0.0
      %636 = vmatpush2.msra.mxu0 0.0
      %637 = vmatprep.subr.mxu0 0.0
      %638 = vmatpush2.msra.mxu0 0.0
      %639 = vmatprep.subr.mxu0 0.0
      %640 = vmatpush2.msra.mxu0 0.0
      %641 = vmatprep.subr.mxu0 0.0
      %642 = vmatpush2.msra.mxu0 0.0
      %643 = vmatprep.subr.mxu0 0.0
      %644 = vmatpush2.msra.mxu0 0.0
      %645 = vmatprep.subr.mxu0 0.0
      %646 = vmatpush2.msra.mxu0 0.0
      %647 = vmatprep.mubr.f32.mxu0 0.0
      %648 = vmatmul.mubr.f32.gmra.mxu0 %v566
      %v649 = vpop.f32.mrf.mxu0
      %v650 = vadd.f32 0.0, %v649
      %v651 = vpop.f32.mrf.mxu0
      %652 = vmatprep.mubr.f32.mxu0 0.0
      %653 = vmatmul.mubr.f32.gmra.mxu0 %v569
      %v654 = vpop.f32.mrf.mxu0
      %v655 = vadd.f32 0.0, %v654
      %v656 = vpop.f32.mrf.mxu0
      %657 = vmatprep.mubr.f32.mxu0 0.0
      %658 = vmatmul.mubr.f32.gmra.mxu0 %v572
      %v659 = vpop.f32.mrf.mxu0
      %v660 = vadd.f32 0.0, %v659
      %v661 = vpop.f32.mrf.mxu0
      %662 = vmatprep.mubr.f32.mxu0 0.0
      %663 = vmatmul.mubr.f32.gmra.mxu0 %v575
      %v664 = vpop.f32.mrf.mxu0
      %v665 = vadd.f32 0.0, %v664
      %v666 = vpop.f32.mrf.mxu0
      %667 = vmatprep.mubr.f32.mxu0 0.0
      %668 = vmatmul.mubr.f32.gmra.mxu0 %v578
      %v669 = vpop.f32.mrf.mxu0
      %v670 = vadd.f32 0.0, %v669
      %v671 = vpop.f32.mrf.mxu0
      %672 = vmatprep.mubr.f32.mxu0 0.0
      %673 = vmatmul.mubr.f32.gmra.mxu0 %v581
      %v674 = vpop.f32.mrf.mxu0
      %v675 = vadd.f32 0.0, %v674
      %v676 = vpop.f32.mrf.mxu0
      %677 = vdwg.mxu0
      %v678 = vadd.f32 %v534, %v650
      %v679 = vadd.f32 %v535, %v655
      %v680 = vadd.f32 %v536, %v660
      %v681 = vadd.f32 %v537, %v665
      %v682 = vadd.f32 %v538, %v670
      %v683 = vadd.f32 %v539, %v675
      %v684 = vtanh.pop %v678
      %v685 = vtanh.pop %v679
      %v686 = vtanh.pop %v680
      %v687 = vtanh.pop %v681
      %v688 = vtanh.pop %v682
      %v689 = vtanh.pop %v683
      %vm690 = vcmp.eq.f32.partialorder %v279, 2.0
      %v691 = vsel %vm690, 1, 0
      %v692 = vlaneseq
      %v693 = vshrl.u32 %v692, 7
      %v694 = vsub.s32 0, %v693
      %v695 = vrot.slane %v691, %v694
      %vm696 = vcmp.eq.s32.totalorder %v695, 1
      %v697 = vsel %vm696, %v684, 0.0
      %v698 = vsel %vm696, %v685, 0.0
      %v699 = vsel %vm696, %v686, 0.0
      %v700 = vsel %vm696, %v687, 0.0
      %v701 = vsel %vm696, %v688, 0.0
      %v702 = vsel %vm696, %v689, 0.0
      %v703 = vadd.f32 %v559, %v697
      %v704 = vadd.f32 %v560, %v698
      %v705 = vadd.f32 %v561, %v699
      %v706 = vadd.f32 %v562, %v700
      %v707 = vadd.f32 %v563, %v701
      %v708 = vadd.f32 %v564, %v702
      %v710 = vsel %vm420, %v697, 0
      %v713 = vsel %vm420, %v698, 0
      %v716 = vsel %vm420, %v699, 0
      %v719 = vsel %vm420, %v700, 0
      %v722 = vsel %vm420, %v701, 0
      %v725 = vsel %vm420, %v702, 0
      %727 = vmatprep.subr.mxu0 0.0
      %728 = vmatpush1.msra.mxu0 0.0
      %729 = vmatprep.subr.mxu0 0.0
      %730 = vmatpush1.msra.mxu0 0.0
      %731 = vmatprep.subr.mxu0 0.0
      %732 = vmatpush1.msra.mxu0 0.0
      %733 = vmatprep.subr.mxu0 0.0
      %734 = vmatpush1.msra.mxu0 0.0
      %735 = vmatprep.subr.mxu0 0.0
      %736 = vmatpush1.msra.mxu0 0.0
      %737 = vmatprep.subr.mxu0 0.0
      %738 = vmatpush1.msra.mxu0 0.0
      %739 = vmatprep.subr.mxu0 0.0
      %740 = vmatpush1.msra.mxu0 0.0
      %741 = vmatprep.subr.mxu0 0.0
      %742 = vmatpush1.msra.mxu0 0.0
      %743 = vmatprep.subr.mxu0 0.0
      %744 = vmatpush1.msra.mxu0 0.0
      %745 = vmatprep.subr.mxu0 0.0
      %746 = vmatpush1.msra.mxu0 0.0
      %747 = vmatprep.subr.mxu0 0.0
      %748 = vmatpush1.msra.mxu0 0.0
      %749 = vmatprep.subr.mxu0 0.0
      %750 = vmatpush1.msra.mxu0 0.0
      %751 = vmatprep.subr.mxu0 0.0
      %752 = vmatpush1.msra.mxu0 0.0
      %753 = vmatprep.subr.mxu0 0.0
      %754 = vmatpush1.msra.mxu0 0.0
      %755 = vmatprep.subr.mxu0 0.0
      %756 = vmatpush1.msra.mxu0 %v276
      %757 = vmatprep.subr.mxu0 0.0
      %758 = vmatpush1.msra.mxu0 %v275
      %759 = vmatprep.subr.mxu0 0.0
      %760 = vmatpush2.msra.mxu0 0.0
      %761 = vmatprep.subr.mxu0 0.0
      %762 = vmatpush2.msra.mxu0 0.0
      %763 = vmatprep.subr.mxu0 0.0
      %764 = vmatpush2.msra.mxu0 0.0
      %765 = vmatprep.subr.mxu0 0.0
      %766 = vmatpush2.msra.mxu0 0.0
      %767 = vmatprep.subr.mxu0 0.0
      %768 = vmatpush2.msra.mxu0 0.0
      %769 = vmatprep.subr.mxu0 0.0
      %770 = vmatpush2.msra.mxu0 0.0
      %771 = vmatprep.subr.mxu0 0.0
      %772 = vmatpush2.msra.mxu0 0.0
      %773 = vmatprep.subr.mxu0 0.0
      %774 = vmatpush2.msra.mxu0 0.0
      %775 = vmatprep.subr.mxu0 0.0
      %776 = vmatpush2.msra.mxu0 0.0
      %777 = vmatprep.subr.mxu0 0.0
      %778 = vmatpush2.msra.mxu0 0.0
      %779 = vmatprep.subr.mxu0 0.0
      %780 = vmatpush2.msra.mxu0 0.0
      %781 = vmatprep.subr.mxu0 0.0
      %782 = vmatpush2.msra.mxu0 0.0
      %783 = vmatprep.subr.mxu0 0.0
      %784 = vmatpush2.msra.mxu0 0.0
      %785 = vmatprep.subr.mxu0 0.0
      %786 = vmatpush2.msra.mxu0 0.0
      %787 = vmatprep.subr.mxu0 0.0
      %788 = vmatpush2.msra.mxu0 0.0
      %789 = vmatprep.subr.mxu0 0.0
      %790 = vmatpush2.msra.mxu0 0.0
      %791 = vmatprep.mubr.f32.mxu0 0.0
      %792 = vmatmul.mubr.f32.gmra.mxu0 %v710
      %v793 = vpop.f32.mrf.mxu0
      %v794 = vadd.f32 0.0, %v793
      %v795 = vpop.f32.mrf.mxu0
      %796 = vmatprep.mubr.f32.mxu0 0.0
      %797 = vmatmul.mubr.f32.gmra.mxu0 %v713
      %v798 = vpop.f32.mrf.mxu0
      %v799 = vadd.f32 0.0, %v798
      %v800 = vpop.f32.mrf.mxu0
      %801 = vmatprep.mubr.f32.mxu0 0.0
      %802 = vmatmul.mubr.f32.gmra.mxu0 %v716
      %v803 = vpop.f32.mrf.mxu0
      %v804 = vadd.f32 0.0, %v803
      %v805 = vpop.f32.mrf.mxu0
      %806 = vmatprep.mubr.f32.mxu0 0.0
      %807 = vmatmul.mubr.f32.gmra.mxu0 %v719
      %v808 = vpop.f32.mrf.mxu0
      %v809 = vadd.f32 0.0, %v808
      %v810 = vpop.f32.mrf.mxu0
      %811 = vmatprep.mubr.f32.mxu0 0.0
      %812 = vmatmul.mubr.f32.gmra.mxu0 %v722
      %v813 = vpop.f32.mrf.mxu0
      %v814 = vadd.f32 0.0, %v813
      %v815 = vpop.f32.mrf.mxu0
      %816 = vmatprep.mubr.f32.mxu0 0.0
      %817 = vmatmul.mubr.f32.gmra.mxu0 %v725
      %v818 = vpop.f32.mrf.mxu0
      %v819 = vadd.f32 0.0, %v818
      %v820 = vpop.f32.mrf.mxu0
      %821 = vdwg.mxu0
      %v822 = vadd.f32 %v678, %v794
      %v823 = vadd.f32 %v679, %v799
      %v824 = vadd.f32 %v680, %v804
      %v825 = vadd.f32 %v681, %v809
      %v826 = vadd.f32 %v682, %v814
      %v827 = vadd.f32 %v683, %v819
      %v828 = vtanh.pop %v822
      %v829 = vtanh.pop %v823
      %v830 = vtanh.pop %v824
      %v831 = vtanh.pop %v825
      %v832 = vtanh.pop %v826
      %v833 = vtanh.pop %v827
      %vm834 = vcmp.eq.f32.partialorder %v279, 3.0
      %v835 = vsel %vm834, 1, 0
      %v836 = vlaneseq
      %v837 = vshrl.u32 %v836, 7
      %v838 = vsub.s32 0, %v837
      %v839 = vrot.slane %v835, %v838
      %vm840 = vcmp.eq.s32.totalorder %v839, 1
      %v841 = vsel %vm840, %v828, 0.0
      %v842 = vsel %vm840, %v829, 0.0
      %v843 = vsel %vm840, %v830, 0.0
      %v844 = vsel %vm840, %v831, 0.0
      %v845 = vsel %vm840, %v832, 0.0
      %v846 = vsel %vm840, %v833, 0.0
      %v847 = vadd.f32 %v703, %v841
      %v848 = vadd.f32 %v704, %v842
      %v849 = vadd.f32 %v705, %v843
      %v850 = vadd.f32 %v706, %v844
      %v851 = vadd.f32 %v707, %v845
      %v852 = vadd.f32 %v708, %v846
      %v853 = vld [vmem:[%s2] sm:$0xff]
      %v854 = vld [vmem:[%s2 + $0x8] sm:$0xff]
      %v856 = vsel %vm420, %v847, 0
      %v859 = vsel %vm420, %v848, 0
      %v862 = vsel %vm420, %v849, 0
      %v865 = vsel %vm420, %v850, 0
      %v868 = vsel %vm420, %v851, 0
      %v871 = vsel %vm420, %v852, 0
      %873 = vmatprep.subr.mxu0 0.0
      %874 = vmatpush1.msra.mxu0 0.0
      %875 = vmatprep.subr.mxu0 0.0
      %876 = vmatpush1.msra.mxu0 0.0
      %877 = vmatprep.subr.mxu0 0.0
      %878 = vmatpush1.msra.mxu0 0.0
      %879 = vmatprep.subr.mxu0 0.0
      %880 = vmatpush1.msra.mxu0 0.0
      %881 = vmatprep.subr.mxu0 0.0
      %882 = vmatpush1.msra.mxu0 0.0
      %883 = vmatprep.subr.mxu0 0.0
      %884 = vmatpush1.msra.mxu0 0.0
      %885 = vmatprep.subr.mxu0 0.0
      %886 = vmatpush1.msra.mxu0 0.0
      %887 = vmatprep.subr.mxu0 0.0
      %888 = vmatpush1.msra.mxu0 0.0
      %889 = vmatprep.subr.mxu0 0.0
      %890 = vmatpush1.msra.mxu0 0.0
      %891 = vmatprep.subr.mxu0 0.0
      %892 = vmatpush1.msra.mxu0 0.0
      %893 = vmatprep.subr.mxu0 0.0
      %894 = vmatpush1.msra.mxu0 0.0
      %895 = vmatprep.subr.mxu0 0.0
      %896 = vmatpush1.msra.mxu0 0.0
      %897 = vmatprep.subr.mxu0 0.0
      %898 = vmatpush1.msra.mxu0 0.0
      %899 = vmatprep.subr.mxu0 0.0
      %900 = vmatpush1.msra.mxu0 0.0
      %901 = vmatprep.subr.mxu0 0.0
      %902 = vmatpush1.msra.mxu0 %v854
      %903 = vmatprep.subr.mxu0 0.0
      %904 = vmatpush1.msra.mxu0 %v853
      %905 = vmatprep.subr.mxu0 0.0
      %906 = vmatpush2.msra.mxu0 0.0
      %907 = vmatprep.subr.mxu0 0.0
      %908 = vmatpush2.msra.mxu0 0.0
      %909 = vmatprep.subr.mxu0 0.0
      %910 = vmatpush2.msra.mxu0 0.0
      %911 = vmatprep.subr.mxu0 0.0
      %912 = vmatpush2.msra.mxu0 0.0
      %913 = vmatprep.subr.mxu0 0.0
      %914 = vmatpush2.msra.mxu0 0.0
      %915 = vmatprep.subr.mxu0 0.0
      %916 = vmatpush2.msra.mxu0 0.0
      %917 = vmatprep.subr.mxu0 0.0
      %918 = vmatpush2.msra.mxu0 0.0
      %919 = vmatprep.subr.mxu0 0.0
      %920 = vmatpush2.msra.mxu0 0.0
      %921 = vmatprep.subr.mxu0 0.0
      %922 = vmatpush2.msra.mxu0 0.0
      %923 = vmatprep.subr.mxu0 0.0
      %924 = vmatpush2.msra.mxu0 0.0
      %925 = vmatprep.subr.mxu0 0.0
      %926 = vmatpush2.msra.mxu0 0.0
      %927 = vmatprep.subr.mxu0 0.0
      %928 = vmatpush2.msra.mxu0 0.0
      %929 = vmatprep.subr.mxu0 0.0
      %930 = vmatpush2.msra.mxu0 0.0
      %931 = vmatprep.subr.mxu0 0.0
      %932 = vmatpush2.msra.mxu0 0.0
      %933 = vmatprep.subr.mxu0 0.0
      %934 = vmatpush2.msra.mxu0 0.0
      %935 = vmatprep.subr.mxu0 0.0
      %936 = vmatpush2.msra.mxu0 0.0
      %937 = vmatprep.mubr.f32.mxu0 0.0
      %938 = vmatmul.mubr.f32.gmra.mxu0 %v856
      %v939 = vpop.f32.mrf.mxu0
      %v940 = vadd.f32 0.0, %v939
      %v941 = vpop.f32.mrf.mxu0
      %942 = vmatprep.mubr.f32.mxu0 0.0
      %943 = vmatmul.mubr.f32.gmra.mxu0 %v859
      %v944 = vpop.f32.mrf.mxu0
      %v945 = vadd.f32 0.0, %v944
      %v946 = vpop.f32.mrf.mxu0
      %947 = vmatprep.mubr.f32.mxu0 0.0
      %948 = vmatmul.mubr.f32.gmra.mxu0 %v862
      %v949 = vpop.f32.mrf.mxu0
      %v950 = vadd.f32 0.0, %v949
      %v951 = vpop.f32.mrf.mxu0
      %952 = vmatprep.mubr.f32.mxu0 0.0
      %953 = vmatmul.mubr.f32.gmra.mxu0 %v865
      %v954 = vpop.f32.mrf.mxu0
      %v955 = vadd.f32 0.0, %v954
      %v956 = vpop.f32.mrf.mxu0
      %957 = vmatprep.mubr.f32.mxu0 0.0
      %958 = vmatmul.mubr.f32.gmra.mxu0 %v868
      %v959 = vpop.f32.mrf.mxu0
      %v960 = vadd.f32 0.0, %v959
      %v961 = vpop.f32.mrf.mxu0
      %962 = vmatprep.mubr.f32.mxu0 0.0
      %963 = vmatmul.mubr.f32.gmra.mxu0 %v871
      %v964 = vpop.f32.mrf.mxu0
      %v965 = vadd.f32 0.0, %v964
      %v966 = vpop.f32.mrf.mxu0
      %967 = vdwg.mxu0
      %v968 = vadd.f32 %v269, %v940
      %v969 = vadd.f32 %v270, %v945
      %v970 = vadd.f32 %v271, %v950
      %v971 = vadd.f32 %v272, %v955
      %v972 = vadd.f32 %v273, %v960
      %v973 = vadd.f32 %v274, %v965
      %974 = vst [vmem:[%s261] sm:$0xff] %v968
      %975 = vst [vmem:[%s261 + $0x8] sm:$0xff] %v969
      %976 = vst [vmem:[%s261 + $0x10] sm:$0xff] %v970
      %977 = vst [vmem:[%s261 + $0x18] sm:$0xff] %v971
      %978 = vst [vmem:[%s261 + $0x20] sm:$0xff] %v972
      %979 = vst [vmem:[%s261 + $0x28] sm:$0xff] %v973
      %v980 = vmul.f32 %v847, %v847
      %v981 = vmul.f32 %v848, %v848
      %v982 = vmul.f32 %v849, %v849
      %v983 = vmul.f32 %v850, %v850
      %v984 = vmul.f32 %v851, %v851
      %v985 = vmul.f32 %v852, %v852
      %v986 = vsub.f32 1.0, %v980
      %v987 = vsub.f32 1.0, %v981
      %v988 = vsub.f32 1.0, %v982
      %v989 = vsub.f32 1.0, %v983
      %v990 = vsub.f32 1.0, %v984
      %v991 = vsub.f32 1.0, %v985
      %v992 = vlaneseq
      %v993 = vshrl.u32 %v992, 7
      %v994 = vsub.s32 0, %v993
      %v995 = vrot.slane %v278, %v994
      %v996 = vmul.f32 %v986, %v995
      %v997 = vmul.f32 %v987, %v995
      %v998 = vmul.f32 %v988, %v995
      %v999 = vmul.f32 %v989, %v995
      %v1000 = vmul.f32 %v990, %v995
      %v1001 = vmul.f32 %v991, %v995
      %v1002 = vadd.f32 %v996, 1.0
      %v1003 = vadd.f32 %v997, 1.0
      %v1004 = vadd.f32 %v998, 1.0
      %v1005 = vadd.f32 %v999, 1.0
      %v1006 = vadd.f32 %v1000, 1.0
      %v1007 = vadd.f32 %v1001, 1.0
      %v1008 = vand.u32 2147483647, %v1002
      %v1009 = vand.u32 2147483647, %v1003
      %v1010 = vand.u32 2147483647, %v1004
      %v1011 = vand.u32 2147483647, %v1005
      %v1012 = vand.u32 2147483647, %v1006
      %v1013 = vand.u32 2147483647, %v1007
      %v1014 = vadd.f32 %v1008, 1e-08
      %v1015 = vadd.f32 %v1009, 1e-08
      %v1016 = vadd.f32 %v1010, 1e-08
      %v1017 = vadd.f32 %v1011, 1e-08
      %v1018 = vadd.f32 %v1012, 1e-08
      %v1019 = vadd.f32 %v1013, 1e-08
      %v1020 = vlog2.pop %v1014
      %v1021 = vmul.f32 %v1020, 0.6931472
      %v1022 = vlog2.pop %v1015
      %v1023 = vmul.f32 %v1022, 0.6931472
      %v1024 = vlog2.pop %v1016
      %v1025 = vmul.f32 %v1024, 0.6931472
      %v1026 = vlog2.pop %v1017
      %v1027 = vmul.f32 %v1026, 0.6931472
      %v1028 = vlog2.pop %v1018
      %v1029 = vmul.f32 %v1028, 0.6931472
      %v1030 = vlog2.pop %v1019
      %v1031 = vmul.f32 %v1030, 0.6931472
      %v1032 = vld [vmem:[%s4] sm:$0xff]
      %v1033 = vld [vmem:[%s4 + $0x8] sm:$0xff]
      %v1035 = vsel %vm420, %v1021, 0
      %v1038 = vsel %vm420, %v1023, 0
      %v1041 = vsel %vm420, %v1025, 0
      %v1044 = vsel %vm420, %v1027, 0
      %v1047 = vsel %vm420, %v1029, 0
      %v1050 = vsel %vm420, %v1031, 0
      %1052 = vmatprep.subr.mxu0 0.0
      %1053 = vmatpush1.msra.mxu0 0.0
      %1054 = vmatprep.subr.mxu0 0.0
      %1055 = vmatpush1.msra.mxu0 0.0
      %1056 = vmatprep.subr.mxu0 0.0
      %1057 = vmatpush1.msra.mxu0 0.0
      %1058 = vmatprep.subr.mxu0 0.0
      %1059 = vmatpush1.msra.mxu0 0.0
      %1060 = vmatprep.subr.mxu0 0.0
      %1061 = vmatpush1.msra.mxu0 0.0
      %1062 = vmatprep.subr.mxu0 0.0
      %1063 = vmatpush1.msra.mxu0 0.0
      %1064 = vmatprep.subr.mxu0 0.0
      %1065 = vmatpush1.msra.mxu0 0.0
      %1066 = vmatprep.subr.mxu0 0.0
      %1067 = vmatpush1.msra.mxu0 0.0
      %1068 = vmatprep.subr.mxu0 0.0
      %1069 = vmatpush1.msra.mxu0 0.0
      %1070 = vmatprep.subr.mxu0 0.0
      %1071 = vmatpush1.msra.mxu0 0.0
      %1072 = vmatprep.subr.mxu0 0.0
      %1073 = vmatpush1.msra.mxu0 0.0
      %1074 = vmatprep.subr.mxu0 0.0
      %1075 = vmatpush1.msra.mxu0 0.0
      %1076 = vmatprep.subr.mxu0 0.0
      %1077 = vmatpush1.msra.mxu0 0.0
      %1078 = vmatprep.subr.mxu0 0.0
      %1079 = vmatpush1.msra.mxu0 0.0
      %1080 = vmatprep.subr.mxu0 0.0
      %1081 = vmatpush1.msra.mxu0 %v1033
      %1082 = vmatprep.subr.mxu0 0.0
      %1083 = vmatpush1.msra.mxu0 %v1032
      %1084 = vmatprep.subr.mxu0 0.0
      %1085 = vmatpush2.msra.mxu0 0.0
      %1086 = vmatprep.subr.mxu0 0.0
      %1087 = vmatpush2.msra.mxu0 0.0
      %1088 = vmatprep.subr.mxu0 0.0
      %1089 = vmatpush2.msra.mxu0 0.0
      %1090 = vmatprep.subr.mxu0 0.0
      %1091 = vmatpush2.msra.mxu0 0.0
      %1092 = vmatprep.subr.mxu0 0.0
      %1093 = vmatpush2.msra.mxu0 0.0
      %1094 = vmatprep.subr.mxu0 0.0
      %1095 = vmatpush2.msra.mxu0 0.0
      %1096 = vmatprep.subr.mxu0 0.0
      %1097 = vmatpush2.msra.mxu0 0.0
      %1098 = vmatprep.subr.mxu0 0.0
      %1099 = vmatpush2.msra.mxu0 0.0
      %1100 = vmatprep.subr.mxu0 0.0
      %1101 = vmatpush2.msra.mxu0 0.0
      %1102 = vmatprep.subr.mxu0 0.0
      %1103 = vmatpush2.msra.mxu0 0.0
      %1104 = vmatprep.subr.mxu0 0.0
      %1105 = vmatpush2.msra.mxu0 0.0
      %1106 = vmatprep.subr.mxu0 0.0
      %1107 = vmatpush2.msra.mxu0 0.0
      %1108 = vmatprep.subr.mxu0 0.0
      %1109 = vmatpush2.msra.mxu0 0.0
      %1110 = vmatprep.subr.mxu0 0.0
      %1111 = vmatpush2.msra.mxu0 0.0
      %1112 = vmatprep.subr.mxu0 0.0
      %1113 = vmatpush2.msra.mxu0 0.0
      %1114 = vmatprep.subr.mxu0 0.0
      %1115 = vmatpush2.msra.mxu0 0.0
      %1116 = vmatprep.mubr.f32.mxu0 0.0
      %1117 = vmatmul.mubr.f32.gmra.mxu0 %v1035
      %v1118 = vpop.f32.mrf.mxu0
      %v1119 = vadd.f32 0.0, %v1118
      %v1120 = vpop.f32.mrf.mxu0
      %1121 = vmatprep.mubr.f32.mxu0 0.0
      %1122 = vmatmul.mubr.f32.gmra.mxu0 %v1038
      %v1123 = vpop.f32.mrf.mxu0
      %v1124 = vadd.f32 0.0, %v1123
      %v1125 = vpop.f32.mrf.mxu0
      %1126 = vmatprep.mubr.f32.mxu0 0.0
      %1127 = vmatmul.mubr.f32.gmra.mxu0 %v1041
      %v1128 = vpop.f32.mrf.mxu0
      %v1129 = vadd.f32 0.0, %v1128
      %v1130 = vpop.f32.mrf.mxu0
      %1131 = vmatprep.mubr.f32.mxu0 0.0
      %1132 = vmatmul.mubr.f32.gmra.mxu0 %v1044
      %v1133 = vpop.f32.mrf.mxu0
      %v1134 = vadd.f32 0.0, %v1133
      %v1135 = vpop.f32.mrf.mxu0
      %1136 = vmatprep.mubr.f32.mxu0 0.0
      %1137 = vmatmul.mubr.f32.gmra.mxu0 %v1047
      %v1138 = vpop.f32.mrf.mxu0
      %v1139 = vadd.f32 0.0, %v1138
      %v1140 = vpop.f32.mrf.mxu0
      %1141 = vmatprep.mubr.f32.mxu0 0.0
      %1142 = vmatmul.mubr.f32.gmra.mxu0 %v1050
      %v1143 = vpop.f32.mrf.mxu0
      %v1144 = vadd.f32 0.0, %v1143
      %v1145 = vpop.f32.mrf.mxu0
      %1146 = vdwg.mxu0
      %vm1147 = vcmask 31744
      %1148 = vst.msk [vmem:[%s267] sm:$0xff] %vm1147, %v1119
      %1149 = vst.msk [vmem:[%s267 + $0x8] sm:$0xff] %vm1147, %v1124
      %1150 = vst.msk [vmem:[%s267 + $0x10] sm:$0xff] %vm1147, %v1129
      %1151 = vst.msk [vmem:[%s267 + $0x18] sm:$0xff] %vm1147, %v1134
      %1152 = vst.msk [vmem:[%s267 + $0x20] sm:$0xff] %vm1147, %v1139
      %1153 = vst.msk [vmem:[%s267 + $0x28] sm:$0xff] %vm1147, %v1144
      %s1154 = smul.u32 6, %s18
      %p1155 = scmp.lt.s32.totalorder %s1154, 11
      %s1156 = scalar_select %p1155, %s1154, 11
      %s1157 = smul.addr %s1156, 8
      %s1158 = scalar_lea.vmem %s5, %s1157
      %s1159 = smul.u32 6, %s18
      %p1160 = scmp.lt.s32.totalorder %s1159, 11
      %s1161 = scalar_select %p1160, %s1159, 11
      %s1162 = smul.addr %s1161, 8
      %s1163 = scalar_lea.vmem %s6, %s1162
      // Predicated region
      $region41: #{normalizing_flow_forward.1} parent=39 // pred_check
        %p1164 = pneg %p146
      $region42: #{normalizing_flow_forward.1} parent=39 // pred_check_branch
        %1166 = sbr.rel (%p1164) target = $region44
      $region43: #{normalizing_flow_forward.1} parent=39 // pred_region
        %s1167 = smul.u32 6, %s18
      $region44: #{normalizing_flow_forward.1} parent=39 // pred_fallthru
        _
      // Predicated region
      $region45: #{normalizing_flow_forward.1} parent=39 // pred_check
        %p1168 = pneg %p172
      $region46: #{normalizing_flow_forward.1} parent=39 // pred_check_branch
        %1170 = sbr.rel (%p1168) target = $region48
      $region47: #{normalizing_flow_forward.1} parent=39 // pred_region
        %s1171 = smul.u32 6, %s18
      $region48: #{normalizing_flow_forward.1} parent=39 // pred_fallthru
        _
    $region40: #{normalizing_flow_forward.1} parent=5 // pred_fallthru
      _
    %p1172 = scmp.le.s32.totalorder 2, %s13
    // Predicated region
    $region49: #{normalizing_flow_forward.1} parent=5 // pred_check
      %p1173 = pneg %p1172
    $region50: #{normalizing_flow_forward.1} parent=5 // pred_check_branch
      %1175 = sbr.rel (%p1173) target = $region52
    $region51: #{normalizing_flow_forward.1} parent=5 // pred_region
      %s1176 = ssub.s32 %s13, 2
      // Predicated region
      $region53: #{normalizing_flow_forward.1} parent=51 // pred_check
        %p1177 = pneg %p152
      $region54: #{normalizing_flow_forward.1} parent=51 // pred_check_branch
        %1179 = sbr.rel (%p1177) target = $region56
      $region55: #{normalizing_flow_forward.1} parent=51 // pred_region
        %s1180 = smul.u32 6, %s19
        %p1181 = scmp.lt.s32.totalorder %s1180, 11
        %s1182 = scalar_select %p1181, %s1180, 11
        %s1183 = smul.addr %s1182, 8
        %s1184 = scalar_lea.vmem %s5, %s1183
      $region56: #{normalizing_flow_forward.1} parent=51 // pred_fallthru
        _
      // Predicated region
      $region57: #{normalizing_flow_forward.1} parent=51 // pred_check
        %p1185 = pneg %p178
      $region58: #{normalizing_flow_forward.1} parent=51 // pred_check_branch
        %1187 = sbr.rel (%p1185) target = $region60
      $region59: #{normalizing_flow_forward.1} parent=51 // pred_region
        %s1188 = smul.u32 6, %s19
        %p1189 = scmp.lt.s32.totalorder %s1188, 11
        %s1190 = scalar_select %p1189, %s1188, 11
        %s1191 = smul.addr %s1190, 8
        %s1192 = scalar_lea.vmem %s6, %s1191
      $region60: #{normalizing_flow_forward.1} parent=51 // pred_fallthru
        _
    $region52: #{normalizing_flow_forward.1} parent=5 // pred_fallthru
      _
  $region6: #{normalizing_flow_forward.1} parent=0 // loop_footer
    %s17 = sadd.s32 1, %s13
  $region7: #{normalizing_flow_forward.1} parent=0 // loop_footer_branch
    %12 = sbr.rel target = $region3
  $region8: #{normalizing_flow_forward.1} parent=0 // loop_exit
    _

</llo_original>
